<compile_context>
chip_gen: v6e
topology: v6e:2x2x1
jax: 0.10.0
libtpu: 0.0.40
codegen_flags: <defaults>
</compile_context>

<pallas_src>
import math

import jax
import jax.numpy as jnp
from jax.experimental import pallas as pl
from jax.experimental.pallas import tpu as pltpu

_EPS = 1e-8                     # torch.nn.CosineSimilarity default eps
_VMEM_LIMIT_BYTES = 48 << 20    # safe on v5e/v6e (128 MiB) and v7x (64 MiB)


# ----------------------------------------------------------------------------
# helpers
# ----------------------------------------------------------------------------
def _round_up(x, m):
    return ((x + m - 1) // m) * m


def _lcm(a, b):
    return a * b // math.gcd(a, b)


def _target_tile_bytes():
    """Per-generation input-tile byte target.

    v7x (64 MiB VMEM / 3.2 TB/s HBM) wants the biggest tiles to amortize the
    ~0.35us per-grid-step cost; v5e/v6e are fine around 8 MiB. Double
    buffering of one ~8-12 MiB stream stays well under the 48 MiB VMEM limit.
    """
    try:
        info = pltpu.get_tpu_info()
        vmem = getattr(info, "vmem_capacity_bytes", None)
        if vmem is not None and vmem <= (64 << 20):
            return 12 << 20           # v7x-class part
    except Exception:
        pass
    return 8 << 20


def _choose_tile_rows(total_rows, hidden, itemsize, row_multiple,
                      target_block_bytes=None):
    """Largest row tile holding ~target_block_bytes of input, aligned to
    `row_multiple`, never (much) exceeding the total row count."""
    if target_block_bytes is None:
        target_block_bytes = _target_tile_bytes()
    rows = max(1, target_block_bytes // max(1, hidden * itemsize))
    rows = min(rows, _round_up(total_rows, row_multiple))
    rows = (rows // row_multiple) * row_multiple
    return max(row_multiple, rows)


# ----------------------------------------------------------------------------
# Kernel 1: per-row L2 norm over hidden (flattened rows, non-distributed path)
# ----------------------------------------------------------------------------
def _rownorm_kernel(x_ref, out_ref):
    # x_ref : (tile_r, hidden)   out_ref : (tile_r, 1)
    x = x_ref[...].astype(jnp.float32)
    out_ref[...] = jnp.sqrt(jnp.sum(x * x, axis=-1, keepdims=True))


def row_norms_pallas(x2d, *, tile_rows=None):
    """Per-row L2 norm of a (rows, hidden) array -> (rows,) float32."""
    rows, hidden = x2d.shape
    itemsize = jnp.dtype(x2d.dtype).itemsize
    if tile_rows is None:
        tile_rows = _choose_tile_rows(rows, hidden, itemsize, 8)
    assert tile_rows % 8 == 0
    grid = (pl.cdiv(rows, tile_rows),)
    out = pl.pallas_call(
        _rownorm_kernel,
        out_shape=jax.ShapeDtypeStruct((rows, 1), jnp.float32),
        grid=grid,
        in_specs=[pl.BlockSpec((tile_rows, hidden), lambda i: (i, 0))],
        out_specs=pl.BlockSpec((tile_rows, 1), lambda i: (i, 0)),
        compiler_params=pltpu.CompilerParams(
            dimension_semantics=("parallel",),
            vmem_limit_bytes=_VMEM_LIMIT_BYTES),
        cost_estimate=pl.CostEstimate(
            flops=2 * rows * hidden,
            transcendentals=rows,
            bytes_accessed=rows * hidden * itemsize + rows * 4),
    )(x2d)
    return out[:, 0]


# ----------------------------------------------------------------------------
# Kernel 2: distributed-branch loss (rank is not None and group is not None)
#   output_norm = ||pooler||_2 over hidden     -> per-(batch, sent) scalar
#   loss = cos(norm[:,0], rank) + cos(norm[:,1], rank)
#
# Fully parallel partial-sum kernel: each grid step reduces its row tile to
# per-column (dot, nsq) and a (rsq) partial and writes them to its own output
# block; the trivial sqrt/divide/sum over num_tiles happens in JAX.  Tail
# rows of the last (partial) tile are masked in-kernel.
# ----------------------------------------------------------------------------
def _make_cos_partial_kernel(num_sent, rows):
    def kernel(x_ref, r_ref, dot_ref, nsq_ref, rsq_ref):
        step = pl.program_id(0)
        x = x_ref[...].astype(jnp.float32)                    # (tile_r, hidden)
        r = r_ref[...].astype(jnp.float32)                    # (tile_r, 1)
        tile_r = x.shape[0]

        local = jax.lax.broadcasted_iota(jnp.int32, (tile_r, 1), 0)
        valid = (step * tile_r + local) < rows                # tail mask
        sq = jnp.where(valid, jnp.sum(x * x, axis=-1, keepdims=True), 0.0)
        n = jnp.sqrt(sq)                                      # (tile_r, 1)
        r = jnp.where(valid, r, 0.0)

        # sentence column of each flattened row; tile starts are multiples of
        # num_sent (tile_rows % lcm(8, num_sent) == 0) so the local row index
        # gives the global column.
        col = local % num_sent
        sel = (col == jax.lax.broadcasted_iota(
            jnp.int32, (tile_r, num_sent), 1)).astype(jnp.float32)

        dot = jnp.sum((n * r) * sel, axis=0, keepdims=True)   # (1, num_sent)
        nsq = jnp.sum(sq * sel, axis=0, keepdims=True)        # (1, num_sent)
        # rank appears once per batch element -> count its square on column 0.
        rsq = jnp.sum(jnp.where(col == 0, r * r, 0.0),
                      axis=0, keepdims=True)                  # (1, 1)

        dot_ref[...] = jnp.broadcast_to(dot, (8, num_sent))
        nsq_ref[...] = jnp.broadcast_to(nsq, (8, num_sent))
        rsq_ref[...] = jnp.broadcast_to(rsq, (8, 1))
    return kernel


def cos_loss_pallas(pooler, rank_vec, *, tile_rows=None):
    bs, num_sent, hidden = pooler.shape
    assert num_sent >= 2, "distributed branch uses sentence columns 0 and 1"
    rows = bs * num_sent
    x2d = pooler.reshape(rows, hidden)                        # keeps input dtype
    r_exp = jnp.repeat(rank_vec.astype(jnp.float32).reshape(bs, 1),
                       num_sent, axis=1).reshape(rows, 1)

    itemsize = jnp.dtype(pooler.dtype).itemsize
    row_multiple = _lcm(8, num_sent)
    if tile_rows is None:
        tile_rows = _choose_tile_rows(rows, hidden, itemsize, row_multiple)
    assert tile_rows % row_multiple == 0
    num_tiles = (rows + tile_rows - 1) // tile_rows
    grid = (num_tiles,)

    dots, nsqs, rsqs = pl.pallas_call(
        _make_cos_partial_kernel(num_sent, rows),
        out_shape=(jax.ShapeDtypeStruct((num_tiles * 8, num_sent), jnp.float32),
                   jax.ShapeDtypeStruct((num_tiles * 8, num_sent), jnp.float32),
                   jax.ShapeDtypeStruct((num_tiles * 8, 1), jnp.float32)),
        grid=grid,
        in_specs=[pl.BlockSpec((tile_rows, hidden), lambda i: (i, 0)),
                  pl.BlockSpec((tile_rows, 1), lambda i: (i, 0))],
        out_specs=(pl.BlockSpec((8, num_sent), lambda i: (i, 0)),
                   pl.BlockSpec((8, num_sent), lambda i: (i, 0)),
                   pl.BlockSpec((8, 1), lambda i: (i, 0))),
        compiler_params=pltpu.CompilerParams(
            dimension_semantics=("parallel",),
            vmem_limit_bytes=_VMEM_LIMIT_BYTES),
        cost_estimate=pl.CostEstimate(
            flops=3 * rows * hidden,
            transcendentals=rows,
            bytes_accessed=rows * hidden * itemsize + rows * 4),
    )(x2d, r_exp)

    # Tiny (num_tiles, ...) reduction + cosine finalize in plain JAX.
    dot = jnp.sum(dots[0::8], axis=0)                          # (num_sent,)
    nsq = jnp.sum(nsqs[0::8], axis=0)                          # (num_sent,)
    rsq = jnp.sum(rsqs[0::8, 0], axis=0)                       # scalar
    n_norm = jnp.sqrt(nsq)
    r_norm = jnp.sqrt(rsq)
    # torch.nn.CosineSimilarity: x.y / max(||x||*||y||, eps)
    cos = dot / jnp.maximum(n_norm * r_norm, _EPS)
    return cos[0] + cos[1]


# ----------------------------------------------------------------------------
# Forward (mirrors InformativenessNormCorrelation.forward)
# ----------------------------------------------------------------------------
def forward(pooler_output, rank=None, group=None, *,
            num_informative_pair=2, loss_type="mse", margin=0.0,
            tile_rows=None):
    if rank is not None and group is not None:
        r = rank
        if r.ndim == 3:
            r = jnp.squeeze(r, axis=-1)     # don't squeeze batch when bs == 1
        rank_vec = r[:, 0]                  # (bs,)
        # `group` is squeezed in the torch code but never used afterwards.
        return cos_loss_pallas(pooler_output, rank_vec, tile_rows=tile_rows)

    bs, num_sent, hidden = pooler_output.shape
    norms = row_norms_pallas(
        pooler_output.reshape(bs * num_sent, hidden),
        tile_rows=tile_rows).reshape(bs, num_sent)

    if num_informative_pair == 2:
        list_n = [norms[:, 0::2], norms[:, 1::2]]
    elif num_informative_pair == 1:
        list_n = [norms[:, 1:]]
    elif num_informative_pair == 0:
        list_n = [norms]
    else:
        raise NotImplementedError

    # TODO(synk): the per-row sort (n.sort()[0]) and the tiny (bs, num_sent)
    # elementwise loss stay in plain JAX glue; there is no Pallas sort primitive.
    loss = jnp.float32(0.0)
    for n in list_n:
        n_sorted = jnp.sort(n, axis=-1)
        if loss_type == "l1":
            loss = loss + jnp.mean(jnp.abs(n - n_sorted))
        elif loss_type == "sl1":
            d = jnp.abs(n - n_sorted)
            loss = loss + jnp.mean(jnp.where(d < 1.0, 0.5 * d * d, d - 0.5))
        elif loss_type == "mse":
            loss = loss + jnp.mean((n - n_sorted) ** 2)
        elif loss_type == "margin":
            assert n.shape[1] == 2
            n_intact, n_perturbed = n[:, 0], n[:, 1]
            labels = jnp.ones_like(n_perturbed)
            loss = loss + jnp.mean(
                jnp.maximum(0.0, -labels * (n_intact - n_perturbed) + margin))
        else:
            raise NotImplementedError
    return loss


# ----------------------------------------------------------------------------
if __name__ == "__main__":
    key = jax.random.PRNGKey(0)
    k1, k2, k3, k4 = jax.random.split(key, 4)

    def _cos_ref(a, b, eps=_EPS):
        return jnp.sum(a * b) / jnp.maximum(
            jnp.linalg.norm(a) * jnp.linalg.norm(b), eps)

    # --- distributed branch (rank/group given): parallel partial-sum cosine -
    bs, num_sent, hidden = 8, 2, 32
    pooler = jax.random.normal(k1, (bs, num_sent, hidden), jnp.float32)
    rank = jax.random.uniform(k2, (bs, num_sent, 1), jnp.float32)
    group = jnp.zeros((bs, num_sent, 1), jnp.float32)

    loss_rank = forward(pooler, rank=rank, group=group)
    jax.block_until_ready(loss_rank)

    norms_ref = jnp.linalg.norm(pooler, axis=-1)
    r_ref = rank[:, 0, 0]
    ref_rank = _cos_ref(norms_ref[:, 0], r_ref) + _cos_ref(norms_ref[:, 1], r_ref)
    assert jnp.abs(loss_rank - ref_rank) < 1e-5, (loss_rank, ref_rank)

    # odd batch + tiny tile: exercises the cdiv grid, the in-kernel tail mask
    # (rows=18 not a multiple of tile_rows=8) and the multi-tile partial sums.
    bs_odd = 9
    pooler_odd = jax.random.normal(k3, (bs_odd, num_sent, hidden), jnp.float32)
    rank_odd = jax.random.uniform(k4, (bs_odd, num_sent, 1), jnp.float32)
    loss_odd = forward(pooler_odd, rank=rank_odd, group=group, tile_rows=8)
    jax.block_until_ready(loss_odd)
    norms_odd = jnp.linalg.norm(pooler_odd, axis=-1)
    r_odd = rank_odd[:, 0, 0]
    ref_odd = _cos_ref(norms_odd[:, 0], r_odd) + _cos_ref(norms_odd[:, 1], r_odd)
    assert jnp.abs(loss_odd - ref_odd) < 1e-5, (loss_odd, ref_odd)

    # --- non-distributed branch: flattened-row Pallas norm + sort/mse glue --
    pooler2 = jax.random.normal(k3, (bs, 4, hidden), jnp.float32)
    loss_mse = forward(pooler2, num_informative_pair=2, loss_type="mse",
                       tile_rows=8)   # 32 rows -> 4 grid steps
    jax.block_until_ready(loss_mse)

    norms2 = jnp.linalg.norm(pooler2, axis=-1)
    n1, n2 = norms2[:, 0::2], norms2[:, 1::2]
    ref_mse = (jnp.mean((n1 - jnp.sort(n1, -1)) ** 2) +
               jnp.mean((n2 - jnp.sort(n2, -1)) ** 2))
    assert jnp.abs(loss_mse - ref_mse) < 1e-5, (loss_mse, ref_mse)

    # non-multiple-of-8 row count (masked tail-block write, no pad) + bf16 on
    # the wire (no pre-cast).
    pooler3 = jax.random.normal(k4, (5, 4, hidden), jnp.float32)   # 20 rows
    loss3 = forward(pooler3.astype(jnp.bfloat16), num_informative_pair=0,
                    loss_type="l1", tile_rows=8)
    jax.block_until_ready(loss3)
    n3 = jnp.linalg.norm(pooler3.astype(jnp.bfloat16).astype(jnp.float32),
                         axis=-1)
    ref3 = jnp.mean(jnp.abs(n3 - jnp.sort(n3, -1)))
    assert jnp.abs(loss3 - ref3) < 1e-3, (loss3, ref3)

    print("KERNEL_OK")
</pallas_src>

<mosaic_0001>
module attributes {stable_mosaic.version = 11 : i64} {
  func.func @kernel(%arg0: i32, %arg1: memref<16x32xf32, #tpu.memory_space<vmem>>, %arg2: memref<16x1xf32, #tpu.memory_space<vmem>>, %arg3: memref<8x2xf32, #tpu.memory_space<vmem>>, %arg4: memref<8x2xf32, #tpu.memory_space<vmem>>, %arg5: memref<8x1xf32, #tpu.memory_space<vmem>>) attributes {dimension_semantics = [#tpu.dimension_semantics<parallel>], iteration_bounds = array<i64: 1>, scalar_prefetch = 0 : i64, scratch_operands = 0 : i64, tpu.core_type = #tpu.core_type<tc>, window_params = [{transform_indices = @transform_0, window_bounds = array<i64: 16, 32>}, {transform_indices = @transform_1, window_bounds = array<i64: 16, 1>}, {transform_indices = @transform_2, window_bounds = array<i64: 8, 2>}, {transform_indices = @transform_3, window_bounds = array<i64: 8, 2>}, {transform_indices = @transform_4, window_bounds = array<i64: 8, 1>}]} {
    %c0 = arith.constant 0 : index
    %c0_0 = arith.constant 0 : index
    %0 = vector.load %arg1[%c0, %c0_0] : memref<16x32xf32, #tpu.memory_space<vmem>>, vector<16x32xf32>
    %c0_1 = arith.constant 0 : index
    %c0_2 = arith.constant 0 : index
    %1 = vector.load %arg2[%c0_1, %c0_2] : memref<16x1xf32, #tpu.memory_space<vmem>>, vector<16x1xf32>
    %2 = tpu.iota {dimensions = array<i32: 0>} : vector<16x1xi32>
    %c16_i32 = arith.constant 16 : i32
    %3 = arith.muli %arg0, %c16_i32 : i32
    %4 = vector.broadcast %3 : i32 to vector<16x1xi32>
    %5 = arith.addi %4, %2 : vector<16x1xi32>
    %c16_i32_3 = arith.constant 16 : i32
    %6 = vector.broadcast %c16_i32_3 : i32 to vector<16x1xi32>
    %7 = arith.cmpi slt, %5, %6 : vector<16x1xi32>
    %8 = arith.mulf %0, %0 : vector<16x32xf32>
    %cst = arith.constant dense<0.000000e+00> : vector<16xf32>
    %9 = vector.multi_reduction <add>, %8, %cst [1] : vector<16x32xf32> to vector<16xf32>
    %10 = vector.shape_cast %9 : vector<16xf32> to vector<16x1xf32>
    %cst_4 = arith.constant 0.000000e+00 : f32
    %11 = vector.broadcast %cst_4 : f32 to vector<16x1xf32>
    %12 = arith.select %7, %10, %11 : vector<16x1xi1>, vector<16x1xf32>
    %13 = math.sqrt %12 : vector<16x1xf32>
    %cst_5 = arith.constant 0.000000e+00 : f32
    %14 = vector.broadcast %cst_5 : f32 to vector<16x1xf32>
    %15 = arith.select %7, %1, %14 : vector<16x1xi1>, vector<16x1xf32>
    %c2_i32 = arith.constant 2 : i32
    %c0_i32 = arith.constant 0 : i32
    %16 = arith.cmpi eq, %c2_i32, %c0_i32 : i32
    %c1_i32 = arith.constant 1 : i32
    %17 = arith.select %16, %c1_i32, %c2_i32 : i32
    %18 = vector.broadcast %17 : i32 to vector<16x1xi32>
    %19 = arith.remsi %2, %18 : vector<16x1xi32>
    %c0_i32_6 = arith.constant 0 : i32
    %20 = vector.broadcast %c0_i32_6 : i32 to vector<16x1xi32>
    %21 = arith.cmpi ne, %19, %20 : vector<16x1xi32>
    %c0_i32_7 = arith.constant 0 : i32
    %22 = vector.broadcast %c0_i32_7 : i32 to vector<16x1xi32>
    %23 = arith.cmpi slt, %19, %22 : vector<16x1xi32>
    %c0_i32_8 = arith.constant 0 : i32
    %24 = arith.cmpi slt, %17, %c0_i32_8 : i32
    %25 = vector.broadcast %24 : i1 to vector<16x1xi1>
    %26 = vector.broadcast %25 : vector<16x1xi1> to vector<16x1xi1>
    %27 = arith.xori %23, %26 : vector<16x1xi1>
    %28 = arith.andi %27, %21 : vector<16x1xi1>
    %29 = vector.broadcast %17 : i32 to vector<16x1xi32>
    %30 = arith.addi %19, %29 : vector<16x1xi32>
    %31 = arith.select %28, %30, %19 : vector<16x1xi1>, vector<16x1xi32>
    %32 = tpu.iota {dimensions = array<i32: 1>} : vector<16x2xi32>
    %33 = vector.broadcast %31 : vector<16x1xi32> to vector<16x2xi32>
    %34 = arith.cmpi eq, %33, %32 : vector<16x2xi32>
    %35 = arith.extui %34 : vector<16x2xi1> to vector<16x2xi32>
    %36 = arith.sitofp %35 : vector<16x2xi32> to vector<16x2xf32>
    %37 = arith.mulf %13, %15 : vector<16x1xf32>
    %38 = vector.broadcast %37 : vector<16x1xf32> to vector<16x2xf32>
    %39 = arith.mulf %38, %36 : vector<16x2xf32>
    %cst_9 = arith.constant dense<0.000000e+00> : vector<2xf32>
    %40 = vector.multi_reduction <add>, %39, %cst_9 [0] : vector<16x2xf32> to vector<2xf32>
    %41 = vector.shape_cast %40 : vector<2xf32> to vector<1x2xf32>
    %42 = vector.broadcast %12 : vector<16x1xf32> to vector<16x2xf32>
    %43 = arith.mulf %42, %36 : vector<16x2xf32>
    %cst_10 = arith.constant dense<0.000000e+00> : vector<2xf32>
    %44 = vector.multi_reduction <add>, %43, %cst_10 [0] : vector<16x2xf32> to vector<2xf32>
    %45 = vector.shape_cast %44 : vector<2xf32> to vector<1x2xf32>
    %c0_i32_11 = arith.constant 0 : i32
    %46 = vector.broadcast %c0_i32_11 : i32 to vector<16x1xi32>
    %47 = arith.cmpi eq, %31, %46 : vector<16x1xi32>
    %48 = arith.mulf %15, %15 : vector<16x1xf32>
    %cst_12 = arith.constant 0.000000e+00 : f32
    %49 = vector.broadcast %cst_12 : f32 to vector<16x1xf32>
    %50 = arith.select %47, %48, %49 : vector<16x1xi1>, vector<16x1xf32>
    %cst_13 = arith.constant dense<0.000000e+00> : vector<1xf32>
    %51 = vector.multi_reduction <add>, %50, %cst_13 [0] : vector<16x1xf32> to vector<1xf32>
    %52 = vector.shape_cast %51 : vector<1xf32> to vector<1x1xf32>
    %53 = vector.shape_cast %41 : vector<1x2xf32> to vector<1x2xf32>
    %54 = vector.broadcast %53 : vector<1x2xf32> to vector<8x2xf32>
    %c0_14 = arith.constant 0 : index
    %c0_15 = arith.constant 0 : index
    %55 = vector.load %arg3[%c0_14, %c0_15] : memref<8x2xf32, #tpu.memory_space<vmem>>, vector<8x2xf32>
    tpu.vector_store %arg3[%c0_14, %c0_15], %54 {strides = array<i32>} : memref<8x2xf32, #tpu.memory_space<vmem>>, vector<8x2xf32>,
    %56 = vector.shape_cast %45 : vector<1x2xf32> to vector<1x2xf32>
    %57 = vector.broadcast %56 : vector<1x2xf32> to vector<8x2xf32>
    %c0_16 = arith.constant 0 : index
    %c0_17 = arith.constant 0 : index
    %58 = vector.load %arg4[%c0_16, %c0_17] : memref<8x2xf32, #tpu.memory_space<vmem>>, vector<8x2xf32>
    tpu.vector_store %arg4[%c0_16, %c0_17], %57 {strides = array<i32>} : memref<8x2xf32, #tpu.memory_space<vmem>>, vector<8x2xf32>,
    %59 = vector.shape_cast %52 : vector<1x1xf32> to vector<1x1xf32>
    %60 = vector.broadcast %59 : vector<1x1xf32> to vector<8x1xf32>
    %c0_18 = arith.constant 0 : index
    %c0_19 = arith.constant 0 : index
    %61 = vector.load %arg5[%c0_18, %c0_19] : memref<8x1xf32, #tpu.memory_space<vmem>>, vector<8x1xf32>
    tpu.vector_store %arg5[%c0_18, %c0_19], %60 {strides = array<i32>} : memref<8x1xf32, #tpu.memory_space<vmem>>, vector<8x1xf32>,
    return
  }
  func.func @transform_0(%arg0: i32) -> (i32, i32) {
    %c0_i32 = arith.constant 0 : i32
    %c0_i32_0 = arith.constant 0 : i32
    return %arg0, %c0_i32 : i32, i32
  }
  func.func @transform_1(%arg0: i32) -> (i32, i32) {
    %c0_i32 = arith.constant 0 : i32
    %c0_i32_0 = arith.constant 0 : i32
    return %arg0, %c0_i32 : i32, i32
  }
  func.func @transform_2(%arg0: i32) -> (i32, i32) {
    %c0_i32 = arith.constant 0 : i32
    %c0_i32_0 = arith.constant 0 : i32
    return %arg0, %c0_i32 : i32, i32
  }
  func.func @transform_3(%arg0: i32) -> (i32, i32) {
    %c0_i32 = arith.constant 0 : i32
    %c0_i32_0 = arith.constant 0 : i32
    return %arg0, %c0_i32 : i32, i32
  }
  func.func @transform_4(%arg0: i32) -> (i32, i32) {
    %c0_i32 = arith.constant 0 : i32
    %c0_i32_0 = arith.constant 0 : i32
    return %arg0, %c0_i32 : i32, i32
  }
}

</mosaic_0001>

<llo_original>
// kernel: tpu_custom_call.1
$region0: #{tpu_custom_call.1}
  #allocation0 [shape = 'u32[]', space=smem, size = 0x4, offset = 0x4, fixed_abs, tag = 'smem constant byte address 0x4 - core index']
  #allocation1 [shape = 'u32[144,128]{1,0:T(1,128)}', space=vmem, size = 0x12000, scoped, tag = 'internal scratch']
  %s0 = inlined_call_operand.vmem [shape: f32[16,32], index: 0, kind: input, shape index: {}]
  %s1 = inlined_call_operand.vmem [shape: f32[16,1], index: 1, kind: input, shape index: {}]
  %s2 = inlined_call_operand.vmem [shape: f32[8,2], index: 2, kind: output, shape index: {0}]
  %s3 = inlined_call_operand.vmem [shape: f32[8,2], index: 3, kind: output, shape index: {1}]
  %s4 = inlined_call_operand.vmem [shape: f32[8,1], index: 4, kind: output, shape index: {2}]
  %5 = xla_tuple %s2, %s3, %s4
  %s6 = sld [smem:[#allocation0]]
  $region34: #{tpu_custom_call.1} parent=0
    _
  %s8 = ssub.s32 1, %s6
  %s9 = scalar_select 0, %s8, %s6
  // Predicated region
  $region2: #{tpu_custom_call.1} parent=0 // pred_check
    _
  $region3: #{tpu_custom_call.1} parent=0 // pred_check_branch
    %11 = sbr.rel (0) target = $region5
  $region4: #{tpu_custom_call.1} parent=0 // pred_region
    _
  $region5: #{tpu_custom_call.1} parent=0 // pred_fallthru
    _
  // Predicated region
  $region6: #{tpu_custom_call.1} parent=0 // pred_check
    _
  $region7: #{tpu_custom_call.1} parent=0 // pred_check_branch
    %13 = sbr.rel (0) target = $region9
  $region8: #{tpu_custom_call.1} parent=0 // pred_region
    _
  $region9: #{tpu_custom_call.1} parent=0 // pred_fallthru
    _
  %v14 = vld [vmem:[%s0] sm:$0xff]
  %v15 = vld [vmem:[%s0 + $0x8] sm:$0xff]
  %v16 = vld [vmem:[%s1] sm:$0xff]
  %v17 = vld [vmem:[%s1 + $0x8] sm:$0xff]
  %v18 = vlaneseq
  %v19 = vshrl.u32 %v18, 7
  %v20 = vadd.s32 %v19, 8
  %s21 = smul.u32 0, 16
  %v22 = vstv %s21
  %v23 = vadd.s32 %v22, %v19
  %v24 = vadd.s32 %v22, %v20
  %vm25 = vcmp.lt.s32.totalorder %v23, 16
  %vm26 = vcmp.lt.s32.totalorder %v24, 16
  %v27 = vmul.f32 %v14, %v14
  %v28 = vmul.f32 %v15, %v15
  %vm29 = vcmask 261120
  %v30 = vsel %vm29, %v27, 0.0
  %31 = vadd.xlane.f32.xlu0 %v30
  %v32 = vpop.xlane.xlu0 %31
  %v33 = vsel %vm29, %v28, 0.0
  %34 = vadd.xlane.f32.xlu0 %v33
  %v35 = vpop.xlane.xlu0 %34
  %v36 = vsel %vm25, %v32, 0.0
  %v37 = vsel %vm26, %v35, 0.0
  %v38 = vrsqrt.pop %v36
  %v39 = vmul.f32 %v36, %v38
  %vm40 = vcmp.eq.f32.partialorder %v36, inf
  %v41 = vsel %vm40, %v36, %v39
  %vm42 = vcmp.eq.f32.partialorder %v36, 0.0
  %v43 = vand.u32 %v36, 2147483648
  %v44 = vsel %vm42, %v43, %v41
  %v45 = vrsqrt.pop %v37
  %v46 = vmul.f32 %v37, %v45
  %vm47 = vcmp.eq.f32.partialorder %v37, inf
  %v48 = vsel %vm47, %v37, %v46
  %vm49 = vcmp.eq.f32.partialorder %v37, 0.0
  %v50 = vand.u32 %v37, 2147483648
  %v51 = vsel %vm49, %v50, %v48
  %v52 = vsel %vm25, %v16, 0.0
  %v53 = vsel %vm26, %v17, 0.0
  %vm54 = vcmp.lt.s32.totalorder %v19, 0
  %v55 = vsub.s32 0, %v19
  %v56 = vsel %vm54, %v55, %v19
  %v57 = vshrl.u32 %v56, 1
  %v58 = vand.u32 %v56, 1
  %v59 = vsub.s32 0, %v58
  %v60 = vsel %vm54, %v59, %v58
  %vm61 = vcmp.lt.s32.totalorder %v20, 0
  %v62 = vsub.s32 0, %v20
  %v63 = vsel %vm61, %v62, %v20
  %v64 = vshrl.u32 %v63, 1
  %v65 = vand.u32 %v63, 1
  %v66 = vsub.s32 0, %v65
  %v67 = vsel %vm61, %v66, %v65
  %vm68 = vcmp.ne.s32.totalorder %v60, 0
  %vm69 = vcmp.ne.s32.totalorder %v67, 0
  %vm70 = vcmp.lt.s32.totalorder %v60, 0
  %vm71 = vcmp.lt.s32.totalorder %v67, 0
  %vm72 = vmand %vm70, %vm68
  %vm73 = vmand %vm71, %vm69
  %v74 = vadd.s32 %v60, 2
  %v75 = vadd.s32 %v67, 2
  %v76 = vsel %vm72, %v74, %v60
  %v77 = vsel %vm73, %v75, %v67
  %v78 = vlaneseq
  %v79 = vand.u32 %v78, 127
  %vm80 = vcmp.eq.s32.totalorder %v76, %v79
  %vm81 = vcmp.eq.s32.totalorder %v77, %v79
  %v82 = vsel %vm80, 1, 0
  %v83 = vsel %vm81, 1, 0
  %v84 = vcvt.s32.f32 %v82
  %v85 = vcvt.s32.f32 %v83
  %v86 = vmul.f32 %v44, %v52
  %v87 = vmul.f32 %v51, %v53
  %89 = vset.pattern.permute.xlu0 0
  %90 = vperm.xlu0 %89, %v86
  %v91 = vpop.permute.xlu0 %90
  %94 = vset.pattern.permute.xlu0 0
  %95 = vperm.xlu0 %94, %v87
  %v96 = vpop.permute.xlu0 %95
  %v98 = vmul.f32 %v91, %v84
  %v99 = vmul.f32 %v96, %v85
  %vm100 = vcmask 15360
  %v101 = vsel %vm100, %v98, 0.0
  %v102 = vsel %vm100, %v99, 0.0
  %v103 = vadd.f32 %v101, %v102
  %v104 = vrot.slane %v103, 4
  %v105 = vadd.f32 %v103, %v104
  %v106 = vrot.slane %v105, 2
  %v107 = vadd.f32 %v105, %v106
  %v108 = vrot.slane %v107, 1
  %v109 = vadd.f32 %v107, %v108
  %v110 = vmul.f32 %v36, %v84
  %v111 = vmul.f32 %v37, %v85
  %v112 = vsel %vm100, %v110, 0.0
  %v113 = vsel %vm100, %v111, 0.0
  %v114 = vadd.f32 %v112, %v113
  %v115 = vrot.slane %v114, 4
  %v116 = vadd.f32 %v114, %v115
  %v117 = vrot.slane %v116, 2
  %v118 = vadd.f32 %v116, %v117
  %v119 = vrot.slane %v118, 1
  %v120 = vadd.f32 %v118, %v119
  %vm121 = vcmp.eq.s32.totalorder %v76, 0
  %vm122 = vcmp.eq.s32.totalorder %v77, 0
  %v123 = vmul.f32 %v52, %v52
  %v124 = vmul.f32 %v53, %v53
  %v125 = vsel %vm121, %v123, 0.0
  %v126 = vsel %vm122, %v124, 0.0
  %vm127 = vcmask 7168
  %v128 = vsel %vm127, %v125, 0.0
  %v129 = vsel %vm127, %v126, 0.0
  %v130 = vadd.f32 %v128, %v129
  %v131 = vrot.slane %v130, 4
  %v132 = vadd.f32 %v130, %v131
  %v133 = vrot.slane %v132, 2
  %v134 = vadd.f32 %v132, %v133
  %v135 = vrot.slane %v134, 1
  %v136 = vadd.f32 %v134, %v135
  %137 = vst.msk [vmem:[%s2] sm:$0xff] %vm100, %v109
  %138 = vst.msk [vmem:[%s3] sm:$0xff] %vm100, %v120
  %139 = vst.msk [vmem:[%s4] sm:$0xff] %vm127, %v136
  // Predicated region
  $region10: #{tpu_custom_call.1} parent=0 // pred_check
    _
  $region11: #{tpu_custom_call.1} parent=0 // pred_check_branch
    %141 = sbr.rel (0) target = $region13
  $region12: #{tpu_custom_call.1} parent=0 // pred_region
    _
  $region13: #{tpu_custom_call.1} parent=0 // pred_fallthru
    _
  // Predicated region
  $region14: #{tpu_custom_call.1} parent=0 // pred_check
    _
  $region15: #{tpu_custom_call.1} parent=0 // pred_check_branch
    %143 = sbr.rel (0) target = $region17
  $region16: #{tpu_custom_call.1} parent=0 // pred_region
    _
  $region17: #{tpu_custom_call.1} parent=0 // pred_fallthru
    _
  // Predicated region
  $region18: #{tpu_custom_call.1} parent=0 // pred_check
    _
  $region19: #{tpu_custom_call.1} parent=0 // pred_check_branch
    %145 = sbr.rel (0) target = $region21
  $region20: #{tpu_custom_call.1} parent=0 // pred_region
    _
  $region21: #{tpu_custom_call.1} parent=0 // pred_fallthru
    _
  // Predicated region
  $region22: #{tpu_custom_call.1} parent=0 // pred_check
    _
  $region23: #{tpu_custom_call.1} parent=0 // pred_check_branch
    %147 = sbr.rel (0) target = $region25
  $region24: #{tpu_custom_call.1} parent=0 // pred_region
    _
  $region25: #{tpu_custom_call.1} parent=0 // pred_fallthru
    _
  // Predicated region
  $region26: #{tpu_custom_call.1} parent=0 // pred_check
    _
  $region27: #{tpu_custom_call.1} parent=0 // pred_check_branch
    %149 = sbr.rel (0) target = $region29
  $region28: #{tpu_custom_call.1} parent=0 // pred_region
    _
  $region29: #{tpu_custom_call.1} parent=0 // pred_fallthru
    _
  // Predicated region
  $region30: #{tpu_custom_call.1} parent=0 // pred_check
    _
  $region31: #{tpu_custom_call.1} parent=0 // pred_check_branch
    %151 = sbr.rel (0) target = $region33
  $region32: #{tpu_custom_call.1} parent=0 // pred_region
    _
  $region33: #{tpu_custom_call.1} parent=0 // pred_fallthru
    _

</llo_original>
